<compile_context>
chip_gen: v7x
topology: tpu7x:2x2x1
jax: 0.10.0
libtpu: 0.0.40
codegen_flags: <defaults>
</compile_context>

<pallas_src>
import jax
import jax.numpy as jnp
import numpy as np
from jax.experimental import pallas as pl
from jax.experimental.pallas import tpu as pltpu

KS = 5        # kernel_size (FSLoss default)
_HALO = 8     # aligned zero-halo rows in the H-pool scratch (>= pad)


def _make_fs_loss_kernel(h_true, kernel_size, matmul_dtype):
    """Builds the per-block kernel (closure over static config)."""
    pad = (kernel_size - 1) // 2
    assert pad <= _HALO

    def kernel(x_ref, y_ref, part_ref, hbuf):
        # x_ref / y_ref : (B, Hp, W) block of image planes (native dtype)
        # part_ref      : (1, 8, 128) lane-dense per-block partial |.| sum
        # hbuf          : (B, Hp + 2*_HALO, W) f32 scratch for the H pool
        B, Hp, W = x_ref.shape

        # ---- filter constants, generated in-kernel (no extra inputs) -----
        # 0/1 band for the lane-axis window SUM (exact even in bf16).
        bi = jax.lax.broadcasted_iota(jnp.int32, (W, W), 0)
        bj = jax.lax.broadcasted_iota(jnp.int32, (W, W), 1)
        band_w = jnp.where(jnp.abs(bi - bj) <= pad, 1.0, 0.0).astype(matmul_dtype)

        # Reciprocal of the count_include_pad=False divisor (count_h*count_w);
        # zero on zero-padded rows >= h_true so they contribute nothing.
        hi = jax.lax.broadcasted_iota(jnp.int32, (Hp, W), 0)
        wi = jax.lax.broadcasted_iota(jnp.int32, (Hp, W), 1)
        ch = jnp.minimum(hi + pad, h_true - 1) - jnp.maximum(hi - pad, 0) + 1
        cw = jnp.minimum(wi + pad, W - 1) - jnp.maximum(wi - pad, 0) + 1
        cnt = jnp.maximum((ch * cw).astype(jnp.float32), 1.0)
        inv_cnt = jnp.where(hi < h_true, 1.0 / cnt, 0.0).reshape(1, Hp, W)

        # Difference first (pooling is linear) -> only one tensor is pooled.
        d = x_ref[...].astype(jnp.float32) - y_ref[...].astype(jnp.float32)

        def pool_w_sum(t):
            # 5-tap window SUM along the lane (W) axis: one big MXU matmul.
            s = jnp.dot(t.reshape(B * Hp, W).astype(matmul_dtype), band_w,
                        preferred_element_type=jnp.float32)
            return s.reshape(B, Hp, W)

        # Zero the aligned halos once per grid step; the data region is
        # rewritten by every pool_h_sum call below.
        zhalo = jnp.zeros((B, _HALO, W), jnp.float32)
        hbuf[:, 0:_HALO, :] = zhalo
        hbuf[:, _HALO + Hp:, :] = zhalo

        def pool_h_sum(t):
            # 5-tap window SUM along the sublane (H) axis: shift-and-add via
            # statically shifted reads from the zero-haloed scratch (no band
            # broadcast, no per-plane batched matmuls).
            hbuf[:, _HALO:_HALO + Hp, :] = t
            base = _HALO - pad
            s = hbuf[:, base:base + Hp, :]
            for o in range(1, kernel_size):
                s = s + hbuf[:, base + o:base + o + Hp, :]
            return s

        def avgpool(t):
            return pool_h_sum(pool_w_sum(t)) * inv_cnt

        lp1 = avgpool(d)
        lp2 = avgpool(lp1)
        partial = jnp.sum(jnp.abs(lp1 - lp2))

        # Lane-dense splatted partial sum; no cross-step dependence, so the
        # grid axis stays "parallel" (megacore-shardable on v7x).
        part_ref[...] = jnp.full(part_ref.shape, partial, jnp.float32)

    return kernel


def _vmem_limit_bytes():
    # Generation-aware scoped-VMEM limit: ~3/4 of physical, capped at 96 MiB
    # (=> 48 MiB on v7x's 64 MiB VMEM, 96 MiB on v5e/v6e's 128 MiB).
    phys = 64 << 20
    try:
        phys = int(pltpu.get_tpu_info().vmem_capacity_bytes)
    except Exception:
        pass
    return int(min((phys * 3) // 4, 96 << 20))


def fs_loss(x, y, kernel_size=KS, block_planes=None, matmul_dtype=jnp.bfloat16):
    """x, y: NCHW arrays (any float dtype). Returns scalar FSLoss."""
    assert x.shape == y.shape and x.ndim == 4
    N, C, H, W = x.shape
    nc = N * C

    # Keep native dtype for the DMA; cast to f32 happens inside the kernel.
    xf = x.reshape(nc, H, W)
    yf = y.reshape(nc, H, W)

    # Pad H to a multiple of 8 (zero rows get inv_cnt == 0 in-kernel), so the
    # single big (B*Hp, W) matmul / trivial reshape path always runs.
    Hp = ((H + 7) // 8) * 8
    if Hp != H:
        xf = jnp.pad(xf, ((0, 0), (0, Hp - H), (0, 0)))
        yf = jnp.pad(yf, ((0, 0), (0, Hp - H), (0, 0)))

    vmem_limit = _vmem_limit_bytes()
    if block_planes is None:
        # Per-plane VMEM footprint: 2 inputs x 2 pipeline buffers (native
        # dtype) + ~6 live f32 temporaries + the haloed f32 scratch.
        itemsize = np.dtype(x.dtype).itemsize
        per_plane = Hp * W * (4 * itemsize + 28)
        B = max(1, int(vmem_limit * 0.6) // per_plane)
        # Keep >= 2 grid steps so the "parallel" axis can use both v7x cores.
        B = min(B, max(1, -(-nc // 2)))
    else:
        B = int(block_planes)
    B = max(1, min(B, nc))
    G = -(-nc // B)
    padded = G * B
    if padded != nc:
        # Zero planes -> d = 0 -> contribute nothing to the partial sums.
        zeros = jnp.zeros((padded - nc, Hp, W), xf.dtype)
        xf = jnp.concatenate([xf, zeros], axis=0)
        yf = jnp.concatenate([yf, zeros], axis=0)

    kernel = _make_fs_loss_kernel(H, kernel_size, matmul_dtype)

    partials = pl.pallas_call(
        kernel,
        out_shape=jax.ShapeDtypeStruct((G, 8, 128), jnp.float32),
        grid_spec=pltpu.PrefetchScalarGridSpec(
            num_scalar_prefetch=0,
            grid=(G,),
            in_specs=[
                pl.BlockSpec((B, Hp, W), lambda i: (i, 0, 0)),
                pl.BlockSpec((B, Hp, W), lambda i: (i, 0, 0)),
            ],
            out_specs=pl.BlockSpec((1, 8, 128), lambda i: (i, 0, 0)),
            scratch_shapes=[pltpu.VMEM((B, Hp + 2 * _HALO, W), jnp.float32)],
        ),
        compiler_params=pltpu.CompilerParams(
            dimension_semantics=("parallel",),
            vmem_limit_bytes=vmem_limit),
    )(xf, yf)

    # Each block splats its partial sum into a full (8, 128) tile.
    total = jnp.sum(partials) / float(8 * 128)
    # 0.5 from FilterHigh's normalize factor; divide by the TRUE element count.
    return 0.5 * total / (nc * H * W)


# ----- pure-JAX reference (correctness check only) -----
def _avgpool_ref(x, kernel_size=KS):
    pad = (kernel_size - 1) // 2
    pads = [(0, 0), (0, 0), (pad, pad), (pad, pad)]
    win = (1, 1, kernel_size, kernel_size)
    s = jax.lax.reduce_window(x, 0.0, jax.lax.add, win, (1, 1, 1, 1), pads)
    cnt = jax.lax.reduce_window(jnp.ones_like(x), 0.0, jax.lax.add,
                                win, (1, 1, 1, 1), pads)
    return s / cnt


def _fs_loss_ref(x, y):
    def hp(t):
        lp1 = _avgpool_ref(t)
        lp2 = _avgpool_ref(lp1)
        return 0.5 + (lp1 - lp2) * 0.5
    return jnp.mean(jnp.abs(hp(x) - hp(y)))


if __name__ == "__main__":
    key = jax.random.PRNGKey(0)
    kx, ky = jax.random.split(key)
    x = jax.random.normal(kx, (2, 3, 16, 16), dtype=jnp.float32)
    y = jax.random.normal(ky, (2, 3, 16, 16), dtype=jnp.float32)
    ref = _fs_loss_ref(x, y)

    # Exact path (f32 MXU operands) -- tight tolerance.
    loss_f32 = fs_loss(x, y, matmul_dtype=jnp.float32)
    jax.block_until_ready(loss_f32)
    np.testing.assert_allclose(np.asarray(loss_f32), np.asarray(ref),
                               rtol=2e-4, atol=1e-5)

    # Default fast path (bf16 MXU operands, f32 accumulate / abs / sum).
    loss_bf16 = fs_loss(x, y)
    jax.block_until_ready(loss_bf16)
    np.testing.assert_allclose(np.asarray(loss_bf16), np.asarray(ref),
                               rtol=2e-2, atol=5e-4)

    # Multi-block path with zero-plane padding (G=2), parallel grid.
    loss_blk = fs_loss(x, y, block_planes=4)
    jax.block_until_ready(loss_blk)
    np.testing.assert_allclose(np.asarray(loss_blk), np.asarray(ref),
                               rtol=2e-2, atol=5e-4)

    # Height not a multiple of 8 (zero-padded to 24 inside the wrapper).
    x2 = jax.random.normal(kx, (1, 2, 20, 24), dtype=jnp.float32)
    y2 = jax.random.normal(ky, (1, 2, 20, 24), dtype=jnp.float32)
    ref2 = _fs_loss_ref(x2, y2)
    loss_odd = fs_loss(x2, y2, matmul_dtype=jnp.float32)
    jax.block_until_ready(loss_odd)
    np.testing.assert_allclose(np.asarray(loss_odd), np.asarray(ref2),
                               rtol=2e-4, atol=1e-5)

    print("KERNEL_OK")
</pallas_src>

<mosaic_0001>
module attributes {stable_mosaic.version = 11 : i64} {
  func.func @kernel(%arg0: i32, %arg1: memref<3x16x16xf32, #tpu.memory_space<vmem>>, %arg2: memref<3x16x16xf32, #tpu.memory_space<vmem>>, %arg3: memref<1x8x128xf32, #tpu.memory_space<vmem>>, %arg4: memref<3x32x16xf32, #tpu.memory_space<vmem>>) attributes {dimension_semantics = [#tpu.dimension_semantics<parallel>], iteration_bounds = array<i64: 2>, scalar_prefetch = 0 : i64, scratch_operands = 1 : i64, tpu.core_type = #tpu.core_type<tc>, window_params = [{transform_indices = @transform_0, window_bounds = array<i64: 3, 16, 16>}, {transform_indices = @transform_1, window_bounds = array<i64: 3, 16, 16>}, {transform_indices = @transform_2, window_bounds = array<i64: 1, 8, 128>}]} {
    %0 = tpu.iota {dimensions = array<i32: 0>} : vector<16x16xi32>
    %1 = tpu.iota {dimensions = array<i32: 1>} : vector<16x16xi32>
    %2 = arith.subi %0, %1 : vector<16x16xi32>
    %3 = math.absi %2 : vector<16x16xi32>
    %c2_i32 = arith.constant 2 : i32
    %4 = vector.broadcast %c2_i32 : i32 to vector<16x16xi32>
    %5 = arith.cmpi sle, %3, %4 : vector<16x16xi32>
    %cst = arith.constant 1.000000e+00 : f32
    %cst_0 = arith.constant 0.000000e+00 : f32
    %6 = vector.broadcast %cst : f32 to vector<16x16xf32>
    %7 = vector.broadcast %cst_0 : f32 to vector<16x16xf32>
    %8 = arith.select %5, %6, %7 : vector<16x16xi1>, vector<16x16xf32>
    %9 = tpu.iota {dimensions = array<i32: 0>} : vector<16x16xi32>
    %10 = tpu.iota {dimensions = array<i32: 1>} : vector<16x16xi32>
    %c2_i32_1 = arith.constant 2 : i32
    %11 = vector.broadcast %c2_i32_1 : i32 to vector<16x16xi32>
    %12 = arith.addi %9, %11 : vector<16x16xi32>
    %c15_i32 = arith.constant 15 : i32
    %13 = vector.broadcast %c15_i32 : i32 to vector<16x16xi32>
    %14 = arith.minsi %12, %13 : vector<16x16xi32>
    %c2_i32_2 = arith.constant 2 : i32
    %15 = vector.broadcast %c2_i32_2 : i32 to vector<16x16xi32>
    %16 = arith.subi %9, %15 : vector<16x16xi32>
    %c0_i32 = arith.constant 0 : i32
    %17 = vector.broadcast %c0_i32 : i32 to vector<16x16xi32>
    %18 = arith.maxsi %16, %17 : vector<16x16xi32>
    %19 = arith.subi %14, %18 : vector<16x16xi32>
    %c1_i32 = arith.constant 1 : i32
    %20 = vector.broadcast %c1_i32 : i32 to vector<16x16xi32>
    %21 = arith.addi %19, %20 : vector<16x16xi32>
    %c2_i32_3 = arith.constant 2 : i32
    %22 = vector.broadcast %c2_i32_3 : i32 to vector<16x16xi32>
    %23 = arith.addi %10, %22 : vector<16x16xi32>
    %c15_i32_4 = arith.constant 15 : i32
    %24 = vector.broadcast %c15_i32_4 : i32 to vector<16x16xi32>
    %25 = arith.minsi %23, %24 : vector<16x16xi32>
    %c2_i32_5 = arith.constant 2 : i32
    %26 = vector.broadcast %c2_i32_5 : i32 to vector<16x16xi32>
    %27 = arith.subi %10, %26 : vector<16x16xi32>
    %c0_i32_6 = arith.constant 0 : i32
    %28 = vector.broadcast %c0_i32_6 : i32 to vector<16x16xi32>
    %29 = arith.maxsi %27, %28 : vector<16x16xi32>
    %30 = arith.subi %25, %29 : vector<16x16xi32>
    %c1_i32_7 = arith.constant 1 : i32
    %31 = vector.broadcast %c1_i32_7 : i32 to vector<16x16xi32>
    %32 = arith.addi %30, %31 : vector<16x16xi32>
    %33 = arith.muli %21, %32 : vector<16x16xi32>
    %34 = arith.sitofp %33 : vector<16x16xi32> to vector<16x16xf32>
    %cst_8 = arith.constant 1.000000e+00 : f32
    %35 = vector.broadcast %cst_8 : f32 to vector<16x16xf32>
    %36 = arith.maximumf %34, %35 : vector<16x16xf32>
    %c16_i32 = arith.constant 16 : i32
    %37 = vector.broadcast %c16_i32 : i32 to vector<16x16xi32>
    %38 = arith.cmpi slt, %9, %37 : vector<16x16xi32>
    %cst_9 = arith.constant 1.000000e+00 : f32
    %39 = vector.broadcast %cst_9 : f32 to vector<16x16xf32>
    %40 = arith.divf %39, %36 : vector<16x16xf32>
    %cst_10 = arith.constant 0.000000e+00 : f32
    %41 = vector.broadcast %cst_10 : f32 to vector<16x16xf32>
    %42 = arith.select %38, %40, %41 : vector<16x16xi1>, vector<16x16xf32>
    %43 = vector.shape_cast %42 : vector<16x16xf32> to vector<1x16x16xf32>
    %c0 = arith.constant 0 : index
    %c0_11 = arith.constant 0 : index
    %c0_12 = arith.constant 0 : index
    %44 = vector.load %arg1[%c0, %c0_11, %c0_12] : memref<3x16x16xf32, #tpu.memory_space<vmem>>, vector<3x16x16xf32>
    %c0_13 = arith.constant 0 : index
    %c0_14 = arith.constant 0 : index
    %c0_15 = arith.constant 0 : index
    %45 = vector.load %arg2[%c0_13, %c0_14, %c0_15] : memref<3x16x16xf32, #tpu.memory_space<vmem>>, vector<3x16x16xf32>
    %46 = arith.subf %44, %45 : vector<3x16x16xf32>
    %cst_16 = arith.constant 0.000000e+00 : f32
    %47 = vector.broadcast %cst_16 : f32 to vector<3x8x16xf32>
    %c0_17 = arith.constant 0 : index
    %c0_18 = arith.constant 0 : index
    %c0_19 = arith.constant 0 : index
    %48 = vector.load %arg4[%c0_17, %c0_18, %c0_19] : memref<3x32x16xf32, #tpu.memory_space<vmem>>, vector<3x8x16xf32>
    tpu.vector_store %arg4[%c0_17, %c0_18, %c0_19], %47 {strides = array<i32>} : memref<3x32x16xf32, #tpu.memory_space<vmem>>, vector<3x8x16xf32>,
    %c0_20 = arith.constant 0 : index
    %c24 = arith.constant 24 : index
    %c0_21 = arith.constant 0 : index
    %49 = vector.load %arg4[%c0_20, %c24, %c0_21] : memref<3x32x16xf32, #tpu.memory_space<vmem>>, vector<3x8x16xf32>
    tpu.vector_store %arg4[%c0_20, %c24, %c0_21], %47 {strides = array<i32>} : memref<3x32x16xf32, #tpu.memory_space<vmem>>, vector<3x8x16xf32>,
    %50 = vector.shape_cast %46 : vector<3x16x16xf32> to vector<48x16xf32>
    %cst_22 = arith.constant dense<0.000000e+00> : vector<48x16xf32>
    %51 = tpu.matmul %50, %8, %cst_22 {dimension_numbers = #tpu.dot_dimension_numbers<[1], [0], [0], [1], [0, 0, 1, 1], [], []>} : vector<48x16xf32>, vector<16x16xf32>, vector<48x16xf32> -> vector<48x16xf32>
    %52 = vector.shape_cast %51 : vector<48x16xf32> to vector<3x16x16xf32>
    %c0_23 = arith.constant 0 : index
    %c8 = arith.constant 8 : index
    %c0_24 = arith.constant 0 : index
    %53 = vector.load %arg4[%c0_23, %c8, %c0_24] : memref<3x32x16xf32, #tpu.memory_space<vmem>>, vector<3x16x16xf32>
    tpu.vector_store %arg4[%c0_23, %c8, %c0_24], %52 {strides = array<i32>} : memref<3x32x16xf32, #tpu.memory_space<vmem>>, vector<3x16x16xf32>,
    %c0_25 = arith.constant 0 : index
    %c6 = arith.constant 6 : index
    %c0_26 = arith.constant 0 : index
    %54 = vector.load %arg4[%c0_25, %c6, %c0_26] : memref<3x32x16xf32, #tpu.memory_space<vmem>>, vector<3x16x16xf32>
    %c0_27 = arith.constant 0 : index
    %c7 = arith.constant 7 : index
    %c0_28 = arith.constant 0 : index
    %55 = vector.load %arg4[%c0_27, %c7, %c0_28] : memref<3x32x16xf32, #tpu.memory_space<vmem>>, vector<3x16x16xf32>
    %56 = arith.addf %54, %55 : vector<3x16x16xf32>
    %c0_29 = arith.constant 0 : index
    %c8_30 = arith.constant 8 : index
    %c0_31 = arith.constant 0 : index
    %57 = vector.load %arg4[%c0_29, %c8_30, %c0_31] : memref<3x32x16xf32, #tpu.memory_space<vmem>>, vector<3x16x16xf32>
    %58 = arith.addf %56, %57 : vector<3x16x16xf32>
    %c0_32 = arith.constant 0 : index
    %c9 = arith.constant 9 : index
    %c0_33 = arith.constant 0 : index
    %59 = vector.load %arg4[%c0_32, %c9, %c0_33] : memref<3x32x16xf32, #tpu.memory_space<vmem>>, vector<3x16x16xf32>
    %60 = arith.addf %58, %59 : vector<3x16x16xf32>
    %c0_34 = arith.constant 0 : index
    %c10 = arith.constant 10 : index
    %c0_35 = arith.constant 0 : index
    %61 = vector.load %arg4[%c0_34, %c10, %c0_35] : memref<3x32x16xf32, #tpu.memory_space<vmem>>, vector<3x16x16xf32>
    %62 = arith.addf %60, %61 : vector<3x16x16xf32>
    %63 = vector.broadcast %43 : vector<1x16x16xf32> to vector<3x16x16xf32>
    %64 = arith.mulf %62, %63 : vector<3x16x16xf32>
    %65 = vector.shape_cast %64 : vector<3x16x16xf32> to vector<48x16xf32>
    %cst_36 = arith.constant dense<0.000000e+00> : vector<48x16xf32>
    %66 = tpu.matmul %65, %8, %cst_36 {dimension_numbers = #tpu.dot_dimension_numbers<[1], [0], [0], [1], [0, 0, 1, 1], [], []>} : vector<48x16xf32>, vector<16x16xf32>, vector<48x16xf32> -> vector<48x16xf32>
    %67 = vector.shape_cast %66 : vector<48x16xf32> to vector<3x16x16xf32>
    %c0_37 = arith.constant 0 : index
    %c8_38 = arith.constant 8 : index
    %c0_39 = arith.constant 0 : index
    %68 = vector.load %arg4[%c0_37, %c8_38, %c0_39] : memref<3x32x16xf32, #tpu.memory_space<vmem>>, vector<3x16x16xf32>
    tpu.vector_store %arg4[%c0_37, %c8_38, %c0_39], %67 {strides = array<i32>} : memref<3x32x16xf32, #tpu.memory_space<vmem>>, vector<3x16x16xf32>,
    %c0_40 = arith.constant 0 : index
    %c6_41 = arith.constant 6 : index
    %c0_42 = arith.constant 0 : index
    %69 = vector.load %arg4[%c0_40, %c6_41, %c0_42] : memref<3x32x16xf32, #tpu.memory_space<vmem>>, vector<3x16x16xf32>
    %c0_43 = arith.constant 0 : index
    %c7_44 = arith.constant 7 : index
    %c0_45 = arith.constant 0 : index
    %70 = vector.load %arg4[%c0_43, %c7_44, %c0_45] : memref<3x32x16xf32, #tpu.memory_space<vmem>>, vector<3x16x16xf32>
    %71 = arith.addf %69, %70 : vector<3x16x16xf32>
    %c0_46 = arith.constant 0 : index
    %c8_47 = arith.constant 8 : index
    %c0_48 = arith.constant 0 : index
    %72 = vector.load %arg4[%c0_46, %c8_47, %c0_48] : memref<3x32x16xf32, #tpu.memory_space<vmem>>, vector<3x16x16xf32>
    %73 = arith.addf %71, %72 : vector<3x16x16xf32>
    %c0_49 = arith.constant 0 : index
    %c9_50 = arith.constant 9 : index
    %c0_51 = arith.constant 0 : index
    %74 = vector.load %arg4[%c0_49, %c9_50, %c0_51] : memref<3x32x16xf32, #tpu.memory_space<vmem>>, vector<3x16x16xf32>
    %75 = arith.addf %73, %74 : vector<3x16x16xf32>
    %c0_52 = arith.constant 0 : index
    %c10_53 = arith.constant 10 : index
    %c0_54 = arith.constant 0 : index
    %76 = vector.load %arg4[%c0_52, %c10_53, %c0_54] : memref<3x32x16xf32, #tpu.memory_space<vmem>>, vector<3x16x16xf32>
    %77 = arith.addf %75, %76 : vector<3x16x16xf32>
    %78 = vector.broadcast %43 : vector<1x16x16xf32> to vector<3x16x16xf32>
    %79 = arith.mulf %77, %78 : vector<3x16x16xf32>
    %80 = arith.subf %64, %79 : vector<3x16x16xf32>
    %81 = math.absf %80 : vector<3x16x16xf32>
    %82 = vector.shape_cast %81 : vector<3x16x16xf32> to vector<1x3x16x16xf32>
    %cst_55 = arith.constant dense<0.000000e+00> : vector<1xf32>
    %83 = vector.multi_reduction <add>, %82, %cst_55 [1, 2, 3] : vector<1x3x16x16xf32> to vector<1xf32>
    %84 = vector.shape_cast %83 : vector<1xf32> to vector<1x1x1x1xf32>
    %85 = vector.extract %84[0, 0, 0, 0] : f32 from vector<1x1x1x1xf32>
    %86 = vector.broadcast %85 : f32 to vector<1x8x128xf32>
    %c0_56 = arith.constant 0 : index
    %c0_57 = arith.constant 0 : index
    %c0_58 = arith.constant 0 : index
    %87 = vector.load %arg3[%c0_56, %c0_57, %c0_58] : memref<1x8x128xf32, #tpu.memory_space<vmem>>, vector<1x8x128xf32>
    tpu.vector_store %arg3[%c0_56, %c0_57, %c0_58], %86 {strides = array<i32>} : memref<1x8x128xf32, #tpu.memory_space<vmem>>, vector<1x8x128xf32>,
    return
  }
  func.func @transform_0(%arg0: i32) -> (i32, i32, i32) {
    %c0_i32 = arith.constant 0 : i32
    %c0_i32_0 = arith.constant 0 : i32
    %c0_i32_1 = arith.constant 0 : i32
    return %arg0, %c0_i32, %c0_i32_0 : i32, i32, i32
  }
  func.func @transform_1(%arg0: i32) -> (i32, i32, i32) {
    %c0_i32 = arith.constant 0 : i32
    %c0_i32_0 = arith.constant 0 : i32
    %c0_i32_1 = arith.constant 0 : i32
    return %arg0, %c0_i32, %c0_i32_0 : i32, i32, i32
  }
  func.func @transform_2(%arg0: i32) -> (i32, i32, i32) {
    %c0_i32 = arith.constant 0 : i32
    %c0_i32_0 = arith.constant 0 : i32
    %c0_i32_1 = arith.constant 0 : i32
    return %arg0, %c0_i32, %c0_i32_0 : i32, i32, i32
  }
}

</mosaic_0001>

<llo_original>
// kernel: tpu_custom_call.1
$region0: #{tpu_custom_call.1}
  #allocation0 [shape = 'u32[]', space=smem, size = 0x4, offset = 0x4, fixed_abs, tag = 'smem constant byte address 0x4 - core index']
  #allocation1 [shape = 'u32[144,128]{1,0:T(1,128)}', space=vmem, size = 0x12000, scoped, tag = 'internal scratch']
  #allocation2 [shape = 'f32[3,32,16]{2,1,0:T(8,128)}', space=vmem, size = 0xc000, scoped, tag = 'scratch operand']
  %s0 = inlined_call_operand.hbm [shape: f32[6,16,16], index: 0, kind: input, shape index: {}]
  %s1 = inlined_call_operand.hbm [shape: f32[6,16,16], index: 1, kind: input, shape index: {}]
  %s2 = inlined_call_operand.hbm [shape: f32[2,8,128], index: 2, kind: output, shape index: {}]
  %s3 = sld [smem:[#allocation0]]
  $region49: #{tpu_custom_call.1} parent=0
    _
  %s5 = ssub.s32 1, %s3
  %s6 = scalar_select 0, %s5, %s3
  $region1: #{tpu_custom_call.1} parent=0
    #allocation3 [shape = 'u8[49152]{0}', space=vmem, size = 0xc000, scoped, tag = 'input window, operand 0']
    #allocation4 [shape = 's32[2]{0}', space=sflag, size = 0x8, scoped, tag = 'scoped memory for tpu_custom_call.1']
    #allocation5 [shape = 's32[2]{0}', space=sflag, size = 0x8, scoped, tag = 'scoped memory for tpu_custom_call.1']
    #allocation6 [shape = 'u8[49152]{0}', space=vmem, size = 0xc000, scoped, tag = 'input window, operand 1']
    #allocation7 [shape = 's32[2]{0}', space=sflag, size = 0x8, scoped, tag = 'scoped memory for tpu_custom_call.1']
    #allocation8 [shape = 'u8[8192]{0}', space=vmem, size = 0x2000, scoped, tag = 'output window, operand 0']
    %7 = vsyncpa [#allocation4], 0
    %s8 = scalar_lea.sflag [#allocation4], 1
    %9 = vsyncpa %s8, 0
    %10 = vsyncpa [#allocation7], 0
    %s11 = scalar_lea.sflag [#allocation7], 1
    %12 = vsyncpa %s11, 0
    %13 = vsyncpa [#allocation5], 0
    %s14 = scalar_lea.sflag [#allocation5], 1
    %15 = vsyncpa %s14, 0
    loop: start=0, step=1, limit=4
    $region2: #{tpu_custom_call.1} parent=1 // loop_pre_header
      _
    $region3: #{tpu_custom_call.1} parent=1 // loop_header
      %s17 = sphi 0, %s21
      %p18 = scmp.ge.s32.totalorder %s17, 4
      %s27 = sphi 0, %s29
      %s30 = sphi 0, %s27
      %s31 = sphi 0, %s30
      %s47 = sphi 0, %s31
      %s53 = sphi 0, %s55
      %s56 = sphi 0, %s53
      %s57 = sphi 0, %s56
      %s73 = sphi 0, %s57
      %s79 = sphi 0, %s81
      %s82 = sphi 0, %s79
      %s83 = sphi 0, %s82
      %s99 = sphi 0, %s83
    $region4: #{tpu_custom_call.1} parent=1 // loop_header_branch
      %20 = sbr.rel (%p18) target = $region8
    $region5: #{tpu_custom_call.1} parent=1 // loop_body
      %s22 = ssub.s32 %s17, 1
      %s23 = ssub.s32 %s17, 2
      %s24 = sadd.s32 %s17, 1
      %s25 = ssub.s32 %s17, %s24
      %p26 = scmp.eq.s32.totalorder %s25, 0
      %s28 = sadd.s32 %s27, 1
      %s29 = scalar_select %p26, %s27, %s28
      %p32 = pneg %p26
      %p33 = scmp.eq.s32.totalorder %s17, 1
      %p34 = por %p32, %p33
      %p35 = scmp.ne.s32.totalorder %s27, %s30
      %p36 = scmp.eq.s32.totalorder %s17, 0
      %p37 = por %p35, %p36
      %p38 = scmp.ne.s32.totalorder %s27, %s30
      %p39 = scmp.eq.s32.totalorder %s22, 1
      %p40 = por %p38, %p39
      %p41 = scmp.ne.s32.totalorder %s30, %s31
      %p42 = scmp.eq.s32.totalorder %s22, 0
      %p43 = por %p41, %p42
      %p44 = scmp.ne.s32.totalorder %s30, %s31
      %p45 = scmp.eq.s32.totalorder %s23, 1
      %p46 = por %p44, %p45
      %p48 = scmp.ne.s32.totalorder %s31, %s47
      %p49 = scmp.eq.s32.totalorder %s23, 0
      %p50 = por %p48, %p49
      %s51 = ssub.s32 %s17, %s24
      %p52 = scmp.eq.s32.totalorder %s51, 0
      %s54 = sadd.s32 %s53, 1
      %s55 = scalar_select %p52, %s53, %s54
      %p58 = pneg %p52
      %p59 = scmp.eq.s32.totalorder %s17, 1
      %p60 = por %p58, %p59
      %p61 = scmp.ne.s32.totalorder %s53, %s56
      %p62 = scmp.eq.s32.totalorder %s17, 0
      %p63 = por %p61, %p62
      %p64 = scmp.ne.s32.totalorder %s53, %s56
      %p65 = scmp.eq.s32.totalorder %s22, 1
      %p66 = por %p64, %p65
      %p67 = scmp.ne.s32.totalorder %s56, %s57
      %p68 = scmp.eq.s32.totalorder %s22, 0
      %p69 = por %p67, %p68
      %p70 = scmp.ne.s32.totalorder %s56, %s57
      %p71 = scmp.eq.s32.totalorder %s23, 1
      %p72 = por %p70, %p71
      %p74 = scmp.ne.s32.totalorder %s57, %s73
      %p75 = scmp.eq.s32.totalorder %s23, 0
      %p76 = por %p74, %p75
      %s77 = ssub.s32 %s17, %s24
      %p78 = scmp.eq.s32.totalorder %s77, 0
      %s80 = sadd.s32 %s79, 1
      %s81 = scalar_select %p78, %s79, %s80
      %p84 = pneg %p78
      %p85 = scmp.eq.s32.totalorder %s17, 1
      %p86 = por %p84, %p85
      %p87 = scmp.ne.s32.totalorder %s79, %s82
      %p88 = scmp.eq.s32.totalorder %s17, 0
      %p89 = por %p87, %p88
      %p90 = scmp.ne.s32.totalorder %s79, %s82
      %p91 = scmp.eq.s32.totalorder %s22, 1
      %p92 = por %p90, %p91
      %p93 = scmp.ne.s32.totalorder %s82, %s83
      %p94 = scmp.eq.s32.totalorder %s22, 0
      %p95 = por %p93, %p94
      %p96 = scmp.ne.s32.totalorder %s82, %s83
      %p97 = scmp.eq.s32.totalorder %s23, 1
      %p98 = por %p96, %p97
      %p100 = scmp.ne.s32.totalorder %s83, %s99
      %p101 = scmp.eq.s32.totalorder %s23, 0
      %p102 = por %p100, %p101
      %p103 = scmp.le.s32.totalorder 1, %s17
      %p104 = scmp.lt.s32.totalorder %s17, 3
      %p105 = pnand %p103, %p104
      %p106 = pneg %p105
      // Predicated region
      $region9: #{tpu_custom_call.1} parent=5 // pred_check
        _
      $region10: #{tpu_custom_call.1} parent=5 // pred_check_branch
        %108 = sbr.rel (%p105) target = $region12
      $region11: #{tpu_custom_call.1} parent=5 // pred_region
        %s109 = ssub.s32 %s17, 1
      $region12: #{tpu_custom_call.1} parent=5 // pred_fallthru
        _
      %p110 = scmp.lt.s32.totalorder %s17, 2
      // Predicated region
      $region13: #{tpu_custom_call.1} parent=5 // pred_check
        %p111 = pneg %p110
      $region14: #{tpu_custom_call.1} parent=5 // pred_check_branch
        %113 = sbr.rel (%p111) target = $region16
      $region15: #{tpu_custom_call.1} parent=5 // pred_region
        // Predicated region
        $region17: #{tpu_custom_call.1} parent=15 // pred_check
          %p114 = pneg %p37
        $region18: #{tpu_custom_call.1} parent=15 // pred_check_branch
          %116 = sbr.rel (%p114) target = $region20
        $region19: #{tpu_custom_call.1} parent=15 // pred_region
          %s117 = sand.u32 %s27, 1
          %s118 = scalar_lea.sflag [#allocation4], %s117
          %s119 = sand.u32 %s27, 1
          %s120 = smul.addr %s119, 48
          %s121 = scalar_lea.vmem [#allocation3], %s120
          %s122 = smul.u32 3, %s17
          %s124 = ssub.s32 768, 768
          %125 = vsyncadd %s118, %s124
          %s126 = smul.addr %s122, 2
          %s127 = smul.addr %s126, 128
          %s128 = scalar_lea.hbm %s0, %s127
          %s129 = sshll.u32 %s121, 4
          %s130 = int_to_ptr.vmem [resolvable:$true] %s129
          %135 = dma.hbm_to_vmem [thread:$0]  %s128, 768, %s130, %s118, 128, 128, 8
        $region20: #{tpu_custom_call.1} parent=15 // pred_fallthru
          _
        // Predicated region
        $region21: #{tpu_custom_call.1} parent=15 // pred_check
          %p136 = pneg %p63
        $region22: #{tpu_custom_call.1} parent=15 // pred_check_branch
          %138 = sbr.rel (%p136) target = $region24
        $region23: #{tpu_custom_call.1} parent=15 // pred_region
          %s139 = sand.u32 %s53, 1
          %s140 = scalar_lea.sflag [#allocation7], %s139
          %s141 = sand.u32 %s53, 1
          %s142 = smul.addr %s141, 48
          %s143 = scalar_lea.vmem [#allocation6], %s142
          %s144 = smul.u32 3, %s17
          %s146 = ssub.s32 768, 768
          %147 = vsyncadd %s140, %s146
          %s148 = smul.addr %s144, 2
          %s149 = smul.addr %s148, 128
          %s150 = scalar_lea.hbm %s1, %s149
          %s151 = sshll.u32 %s143, 4
          %s152 = int_to_ptr.vmem [resolvable:$true] %s151
          %157 = dma.hbm_to_vmem [thread:$0]  %s150, 768, %s152, %s140, 128, 128, 8
        $region24: #{tpu_custom_call.1} parent=15 // pred_fallthru
          _
      $region16: #{tpu_custom_call.1} parent=5 // pred_fallthru
        _
      %p158 = scmp.le.s32.totalorder 1, %s17
      %p159 = scmp.lt.s32.totalorder %s17, 3
      %p160 = pnand %p158, %p159
      %p161 = pneg %p160
      // Predicated region
      $region25: #{tpu_custom_call.1} parent=5 // pred_check
        _
      $region26: #{tpu_custom_call.1} parent=5 // pred_check_branch
        %163 = sbr.rel (%p160) target = $region28
      $region27: #{tpu_custom_call.1} parent=5 // pred_region
        %s164 = ssub.s32 %s17, 1
        %s165 = sand.u32 %s30, 1
        %s166 = scalar_lea.sflag [#allocation4], %s165
        %s167 = sand.u32 %s30, 1
        %s168 = smul.addr %s167, 48
        %s169 = scalar_lea.vmem [#allocation3], %s168
        // Predicated region
        $region29: #{tpu_custom_call.1} parent=27 // pred_check
          %p170 = pneg %p43
        $region30: #{tpu_custom_call.1} parent=27 // pred_check_branch
          %172 = sbr.rel (%p170) target = $region32
        $region31: #{tpu_custom_call.1} parent=27 // pred_region
          %173 = dma.done %s166, 768
        $region32: #{tpu_custom_call.1} parent=27 // pred_fallthru
          _
        %s174 = sand.u32 %s56, 1
        %s175 = scalar_lea.sflag [#allocation7], %s174
        %s176 = sand.u32 %s56, 1
        %s177 = smul.addr %s176, 48
        %s178 = scalar_lea.vmem [#allocation6], %s177
        // Predicated region
        $region33: #{tpu_custom_call.1} parent=27 // pred_check
          %p179 = pneg %p69
        $region34: #{tpu_custom_call.1} parent=27 // pred_check_branch
          %181 = sbr.rel (%p179) target = $region36
        $region35: #{tpu_custom_call.1} parent=27 // pred_region
          %182 = dma.done %s175, 768
        $region36: #{tpu_custom_call.1} parent=27 // pred_fallthru
          _
        %s183 = sand.u32 %s30, 1
        %s184 = scalar_lea.sflag [#allocation4], %s183
        %s185 = sand.u32 %s30, 1
        %s186 = smul.addr %s185, 48
        %s187 = scalar_lea.vmem [#allocation3], %s186
        %p188 = pneg %p43
        %p189 = pneg %p40
        %s190 = sand.u32 %s56, 1
        %s191 = scalar_lea.sflag [#allocation7], %s190
        %s192 = sand.u32 %s56, 1
        %s193 = smul.addr %s192, 48
        %s194 = scalar_lea.vmem [#allocation6], %s193
        %p195 = pneg %p69
        %p196 = pneg %p66
        %p197 = pneg %p95
        %p198 = pneg %p92
        %s199 = sand.u32 %s82, 1
        %s200 = scalar_lea.sflag [#allocation5], %s199
        %s201 = sand.u32 %s82, 1
        %s202 = smul.addr %s201, 8
        %s203 = scalar_lea.vmem [#allocation8], %s202
        %s204 = smul.u32 3, %s22
        %s205 = smul.u32 3, %s22
        %v206 = vlaneseq
        %v207 = vshrl.u32 %v206, 7
        %v208 = vadd.s32 %v207, 8
        %v209 = vlaneseq
        %v210 = vand.u32 %v209, 127
        %v211 = vsub.s32 %v207, %v210
        %v212 = vsub.s32 %v208, %v210
        %vm213 = vcmp.lt.s32.totalorder %v211, 0
        %v214 = vsub.s32 0, %v211
        %v215 = vsel %vm213, %v214, %v211
        %vm216 = vcmp.lt.s32.totalorder %v212, 0
        %v217 = vsub.s32 0, %v212
        %v218 = vsel %vm216, %v217, %v212
        %vm219 = vcmp.le.s32.totalorder %v215, 2
        %vm220 = vcmp.le.s32.totalorder %v218, 2
        %v221 = vsel %vm219, 1.0, 0.0
        %v222 = vsel %vm220, 1.0, 0.0
        %v223 = vadd.s32 %v207, 2
        %v224 = vadd.s32 %v208, 2
        %vm225 = vcmp.lt.s32.totalorder %v223, 15
        %v226 = vsel %vm225, %v223, 15
        %vm227 = vcmp.lt.s32.totalorder %v224, 15
        %v228 = vsel %vm227, %v224, 15
        %v229 = vsub.s32 %v207, 2
        %v230 = vsub.s32 %v208, 2
        %vm231 = vcmp.gt.s32.totalorder %v229, 0
        %v232 = vsel %vm231, %v229, 0
        %vm233 = vcmp.gt.s32.totalorder %v230, 0
        %v234 = vsel %vm233, %v230, 0
        %v235 = vsub.s32 %v226, %v232
        %v236 = vsub.s32 %v228, %v234
        %v237 = vadd.s32 %v235, 1
        %v238 = vadd.s32 %v236, 1
        %v239 = vadd.s32 %v210, 2
        %vm240 = vcmp.lt.s32.totalorder %v239, 15
        %v241 = vsel %vm240, %v239, 15
        %v242 = vsub.s32 %v210, 2
        %vm243 = vcmp.gt.s32.totalorder %v242, 0
        %v244 = vsel %vm243, %v242, 0
        %v245 = vsub.s32 %v241, %v244
        %v246 = vadd.s32 %v245, 1
        %v247 = vmul.u32 %v237, %v246
        %v248 = vmul.u32 %v238, %v246
        %v249 = vcvt.s32.f32 %v247
        %v250 = vcvt.s32.f32 %v248
        %v251 = vmax.f32 %v249, 1.0
        %v252 = vmax.f32 %v250, 1.0
        %vm253 = vcmp.lt.s32.totalorder %v207, 16
        %vm254 = vcmp.lt.s32.totalorder %v208, 16
        %v255 = vrcp.pop %v251
        %v256 = vmul.f32 1.0, %v255
        %v257 = vrcp.pop %v252
        %v258 = vmul.f32 1.0, %v257
        %v259 = vsel %vm253, %v256, 0.0
        %v260 = vsel %vm254, %v258, 0.0
        %v261 = vld [vmem:[%s169] sm:$0xff]
        %v262 = vld [vmem:[%s169 + $0x8] sm:$0xff]
        %v263 = vld [vmem:[%s169 + $0x10] sm:$0xff]
        %v264 = vld [vmem:[%s169 + $0x18] sm:$0xff]
        %v265 = vld [vmem:[%s169 + $0x20] sm:$0xff]
        %v266 = vld [vmem:[%s169 + $0x28] sm:$0xff]
        %v267 = vld [vmem:[%s178] sm:$0xff]
        %v268 = vld [vmem:[%s178 + $0x8] sm:$0xff]
        %v269 = vld [vmem:[%s178 + $0x10] sm:$0xff]
        %v270 = vld [vmem:[%s178 + $0x18] sm:$0xff]
        %v271 = vld [vmem:[%s178 + $0x20] sm:$0xff]
        %v272 = vld [vmem:[%s178 + $0x28] sm:$0xff]
        %v273 = vsub.f32 %v261, %v267
        %v274 = vsub.f32 %v262, %v268
        %v275 = vsub.f32 %v263, %v269
        %v276 = vsub.f32 %v264, %v270
        %v277 = vsub.f32 %v265, %v271
        %v278 = vsub.f32 %v266, %v272
        %vm279 = vcmask 130048
        %280 = vst.msk [vmem:[#allocation2] sm:$0xff] %vm279, 0.0
        %281 = vst.msk [vmem:[#allocation2 + $0x20] sm:$0xff] %vm279, 0.0
        %282 = vst.msk [vmem:[#allocation2 + $0x40] sm:$0xff] %vm279, 0.0
        %283 = vst.msk [vmem:[#allocation2 + $0x18] sm:$0xff] %vm279, 0.0
        %284 = vst.msk [vmem:[#allocation2 + $0x38] sm:$0xff] %vm279, 0.0
        %285 = vst.msk [vmem:[#allocation2 + $0x58] sm:$0xff] %vm279, 0.0
        %v287 = vsel %vm279, %v273, 0
        %v290 = vsel %vm279, %v274, 0
        %v293 = vsel %vm279, %v275, 0
        %v296 = vsel %vm279, %v276, 0
        %v299 = vsel %vm279, %v277, 0
        %v302 = vsel %vm279, %v278, 0
        %304 = vmatprep.subr.mxu0 0.0
        %305 = vmatpush1.msra.mxu0 %v221
        %306 = vmatprep.subr.mxu0 0.0
        %307 = vmatpush1.msra.mxu0 %v222
        %308 = vmatprep.subr.mxu0 0.0
        %309 = vmatpush1.msra.mxu0 0.0
        %310 = vmatprep.subr.mxu0 0.0
        %311 = vmatpush1.msra.mxu0 0.0
        %312 = vmatprep.subr.mxu0 0.0
        %313 = vmatpush1.msra.mxu0 0.0
        %314 = vmatprep.subr.mxu0 0.0
        %315 = vmatpush1.msra.mxu0 0.0
        %316 = vmatprep.subr.mxu0 0.0
        %317 = vmatpush1.msra.mxu0 0.0
        %318 = vmatprep.subr.mxu0 0.0
        %319 = vmatpush1.msra.mxu0 0.0
        %320 = vmatprep.subr.mxu0 0.0
        %321 = vmatpush1.msra.mxu0 0.0
        %322 = vmatprep.subr.mxu0 0.0
        %323 = vmatpush1.msra.mxu0 0.0
        %324 = vmatprep.subr.mxu0 0.0
        %325 = vmatpush1.msra.mxu0 0.0
        %326 = vmatprep.subr.mxu0 0.0
        %327 = vmatpush1.msra.mxu0 0.0
        %328 = vmatprep.subr.mxu0 0.0
        %329 = vmatpush1.msra.mxu0 0.0
        %330 = vmatprep.subr.mxu0 0.0
        %331 = vmatpush1.msra.mxu0 0.0
        %332 = vmatprep.subr.mxu0 0.0
        %333 = vmatpush1.msra.mxu0 0.0
        %334 = vmatprep.subr.mxu0 0.0
        %335 = vmatpush1.msra.mxu0 0.0
        %336 = vmatprep.subr.mxu0 0.0
        %337 = vmatpush1.msra.mxu0 0.0
        %338 = vmatprep.subr.mxu0 0.0
        %339 = vmatpush1.msra.mxu0 0.0
        %340 = vmatprep.subr.mxu0 0.0
        %341 = vmatpush1.msra.mxu0 0.0
        %342 = vmatprep.subr.mxu0 0.0
        %343 = vmatpush1.msra.mxu0 0.0
        %344 = vmatprep.subr.mxu0 0.0
        %345 = vmatpush1.msra.mxu0 0.0
        %346 = vmatprep.subr.mxu0 0.0
        %347 = vmatpush1.msra.mxu0 0.0
        %348 = vmatprep.subr.mxu0 0.0
        %349 = vmatpush1.msra.mxu0 0.0
        %350 = vmatprep.subr.mxu0 0.0
        %351 = vmatpush1.msra.mxu0 0.0
        %352 = vmatprep.subr.mxu0 0.0
        %353 = vmatpush1.msra.mxu0 0.0
        %354 = vmatprep.subr.mxu0 0.0
        %355 = vmatpush1.msra.mxu0 0.0
        %356 = vmatprep.subr.mxu0 0.0
        %357 = vmatpush1.msra.mxu0 0.0
        %358 = vmatprep.subr.mxu0 0.0
        %359 = vmatpush1.msra.mxu0 0.0
        %360 = vmatprep.subr.mxu0 0.0
        %361 = vmatpush1.msra.mxu0 0.0
        %362 = vmatprep.subr.mxu0 0.0
        %363 = vmatpush1.msra.mxu0 0.0
        %364 = vmatprep.subr.mxu0 0.0
        %365 = vmatpush1.msra.mxu0 0.0
        %366 = vmatprep.subr.mxu0 0.0
        %367 = vmatpush1.msra.mxu0 0.0
        %368 = vmatprep.mubr.f32.mxu0 0.0
        %369 = vmatmul.mubr.f32.gmra.mrb[0].mxu0 %v287
        %v370 = vpop.f32.mrb[0].mxu0
        %v371 = vadd.f32 0.0, %v370
        %v372 = vpop.f32.mrb[0].mxu0
        %373 = vmatprep.mubr.f32.mxu0 0.0
        %374 = vmatmul.mubr.f32.gmra.mrb[0].mxu0 %v290
        %v375 = vpop.f32.mrb[0].mxu0
        %v376 = vadd.f32 0.0, %v375
        %v377 = vpop.f32.mrb[0].mxu0
        %378 = vmatprep.mubr.f32.mxu0 0.0
        %379 = vmatmul.mubr.f32.gmra.mrb[0].mxu0 %v293
        %v380 = vpop.f32.mrb[0].mxu0
        %v381 = vadd.f32 0.0, %v380
        %v382 = vpop.f32.mrb[0].mxu0
        %383 = vmatprep.mubr.f32.mxu0 0.0
        %384 = vmatmul.mubr.f32.gmra.mrb[0].mxu0 %v296
        %v385 = vpop.f32.mrb[0].mxu0
        %v386 = vadd.f32 0.0, %v385
        %v387 = vpop.f32.mrb[0].mxu0
        %388 = vmatprep.mubr.f32.mxu0 0.0
        %389 = vmatmul.mubr.f32.gmra.mrb[0].mxu0 %v299
        %v390 = vpop.f32.mrb[0].mxu0
        %v391 = vadd.f32 0.0, %v390
        %v392 = vpop.f32.mrb[0].mxu0
        %393 = vmatprep.mubr.f32.mxu0 0.0
        %394 = vmatmul.mubr.f32.gmra.mrb[0].mxu0 %v302
        %v395 = vpop.f32.mrb[0].mxu0
        %v396 = vadd.f32 0.0, %v395
        %v397 = vpop.f32.mrb[0].mxu0
        %398 = vdwg.mxu0
        %399 = vst.msk [vmem:[#allocation2 + $0x8] sm:$0xff] %vm279, %v371
        %400 = vst.msk [vmem:[#allocation2 + $0x10] sm:$0xff] %vm279, %v376
        %401 = vst.msk [vmem:[#allocation2 + $0x28] sm:$0xff] %vm279, %v381
        %402 = vst.msk [vmem:[#allocation2 + $0x30] sm:$0xff] %vm279, %v386
        %403 = vst.msk [vmem:[#allocation2 + $0x48] sm:$0xff] %vm279, %v391
        %404 = vst.msk [vmem:[#allocation2 + $0x50] sm:$0xff] %vm279, %v396
        %v405 = vld [vmem:[#allocation2 + $0x6] sm:$0xff]
        %v406 = vld [vmem:[#allocation2 + $0xe] sm:$0xff]
        %v407 = vld [vmem:[#allocation2 + $0x26] sm:$0xff]
        %v408 = vld [vmem:[#allocation2 + $0x2e] sm:$0xff]
        %v409 = vld [vmem:[#allocation2 + $0x46] sm:$0xff]
        %v410 = vld [vmem:[#allocation2 + $0x4e] sm:$0xff]
        %v411 = vld [vmem:[#allocation2 + $0x7] sm:$0xff]
        %v412 = vld [vmem:[#allocation2 + $0xf] sm:$0xff]
        %v413 = vld [vmem:[#allocation2 + $0x27] sm:$0xff]
        %v414 = vld [vmem:[#allocation2 + $0x2f] sm:$0xff]
        %v415 = vld [vmem:[#allocation2 + $0x47] sm:$0xff]
        %v416 = vld [vmem:[#allocation2 + $0x4f] sm:$0xff]
        %v417 = vadd.f32 %v405, %v411
        %v418 = vadd.f32 %v406, %v412
        %v419 = vadd.f32 %v407, %v413
        %v420 = vadd.f32 %v408, %v414
        %v421 = vadd.f32 %v409, %v415
        %v422 = vadd.f32 %v410, %v416
        %v423 = vld [vmem:[#allocation2 + $0x8] sm:$0xff]
        %v424 = vld [vmem:[#allocation2 + $0x10] sm:$0xff]
        %v425 = vld [vmem:[#allocation2 + $0x28] sm:$0xff]
        %v426 = vld [vmem:[#allocation2 + $0x30] sm:$0xff]
        %v427 = vld [vmem:[#allocation2 + $0x48] sm:$0xff]
        %v428 = vld [vmem:[#allocation2 + $0x50] sm:$0xff]
        %v429 = vadd.f32 %v417, %v423
        %v430 = vadd.f32 %v418, %v424
        %v431 = vadd.f32 %v419, %v425
        %v432 = vadd.f32 %v420, %v426
        %v433 = vadd.f32 %v421, %v427
        %v434 = vadd.f32 %v422, %v428
        %v435 = vld [vmem:[#allocation2 + $0x9] sm:$0xff]
        %v436 = vld [vmem:[#allocation2 + $0x11] sm:$0xff]
        %v437 = vld [vmem:[#allocation2 + $0x29] sm:$0xff]
        %v438 = vld [vmem:[#allocation2 + $0x31] sm:$0xff]
        %v439 = vld [vmem:[#allocation2 + $0x49] sm:$0xff]
        %v440 = vld [vmem:[#allocation2 + $0x51] sm:$0xff]
        %v441 = vadd.f32 %v429, %v435
        %v442 = vadd.f32 %v430, %v436
        %v443 = vadd.f32 %v431, %v437
        %v444 = vadd.f32 %v432, %v438
        %v445 = vadd.f32 %v433, %v439
        %v446 = vadd.f32 %v434, %v440
        %v447 = vld [vmem:[#allocation2 + $0xa] sm:$0xff]
        %v448 = vld [vmem:[#allocation2 + $0x12] sm:$0xff]
        %v449 = vld [vmem:[#allocation2 + $0x2a] sm:$0xff]
        %v450 = vld [vmem:[#allocation2 + $0x32] sm:$0xff]
        %v451 = vld [vmem:[#allocation2 + $0x4a] sm:$0xff]
        %v452 = vld [vmem:[#allocation2 + $0x52] sm:$0xff]
        %v453 = vadd.f32 %v441, %v447
        %v454 = vadd.f32 %v442, %v448
        %v455 = vadd.f32 %v443, %v449
        %v456 = vadd.f32 %v444, %v450
        %v457 = vadd.f32 %v445, %v451
        %v458 = vadd.f32 %v446, %v452
        %v459 = vmul.f32 %v453, %v259
        %v460 = vmul.f32 %v454, %v260
        %v461 = vmul.f32 %v455, %v259
        %v462 = vmul.f32 %v456, %v260
        %v463 = vmul.f32 %v457, %v259
        %v464 = vmul.f32 %v458, %v260
        %v466 = vsel %vm279, %v459, 0
        %v469 = vsel %vm279, %v460, 0
        %v472 = vsel %vm279, %v461, 0
        %v475 = vsel %vm279, %v462, 0
        %v478 = vsel %vm279, %v463, 0
        %v481 = vsel %vm279, %v464, 0
        %483 = vmatprep.subr.mxu0 0.0
        %484 = vmatpush1.msra.mxu0 %v221
        %485 = vmatprep.subr.mxu0 0.0
        %486 = vmatpush1.msra.mxu0 %v222
        %487 = vmatprep.subr.mxu0 0.0
        %488 = vmatpush1.msra.mxu0 0.0
        %489 = vmatprep.subr.mxu0 0.0
        %490 = vmatpush1.msra.mxu0 0.0
        %491 = vmatprep.subr.mxu0 0.0
        %492 = vmatpush1.msra.mxu0 0.0
        %493 = vmatprep.subr.mxu0 0.0
        %494 = vmatpush1.msra.mxu0 0.0
        %495 = vmatprep.subr.mxu0 0.0
        %496 = vmatpush1.msra.mxu0 0.0
        %497 = vmatprep.subr.mxu0 0.0
        %498 = vmatpush1.msra.mxu0 0.0
        %499 = vmatprep.subr.mxu0 0.0
        %500 = vmatpush1.msra.mxu0 0.0
        %501 = vmatprep.subr.mxu0 0.0
        %502 = vmatpush1.msra.mxu0 0.0
        %503 = vmatprep.subr.mxu0 0.0
        %504 = vmatpush1.msra.mxu0 0.0
        %505 = vmatprep.subr.mxu0 0.0
        %506 = vmatpush1.msra.mxu0 0.0
        %507 = vmatprep.subr.mxu0 0.0
        %508 = vmatpush1.msra.mxu0 0.0
        %509 = vmatprep.subr.mxu0 0.0
        %510 = vmatpush1.msra.mxu0 0.0
        %511 = vmatprep.subr.mxu0 0.0
        %512 = vmatpush1.msra.mxu0 0.0
        %513 = vmatprep.subr.mxu0 0.0
        %514 = vmatpush1.msra.mxu0 0.0
        %515 = vmatprep.subr.mxu0 0.0
        %516 = vmatpush1.msra.mxu0 0.0
        %517 = vmatprep.subr.mxu0 0.0
        %518 = vmatpush1.msra.mxu0 0.0
        %519 = vmatprep.subr.mxu0 0.0
        %520 = vmatpush1.msra.mxu0 0.0
        %521 = vmatprep.subr.mxu0 0.0
        %522 = vmatpush1.msra.mxu0 0.0
        %523 = vmatprep.subr.mxu0 0.0
        %524 = vmatpush1.msra.mxu0 0.0
        %525 = vmatprep.subr.mxu0 0.0
        %526 = vmatpush1.msra.mxu0 0.0
        %527 = vmatprep.subr.mxu0 0.0
        %528 = vmatpush1.msra.mxu0 0.0
        %529 = vmatprep.subr.mxu0 0.0
        %530 = vmatpush1.msra.mxu0 0.0
        %531 = vmatprep.subr.mxu0 0.0
        %532 = vmatpush1.msra.mxu0 0.0
        %533 = vmatprep.subr.mxu0 0.0
        %534 = vmatpush1.msra.mxu0 0.0
        %535 = vmatprep.subr.mxu0 0.0
        %536 = vmatpush1.msra.mxu0 0.0
        %537 = vmatprep.subr.mxu0 0.0
        %538 = vmatpush1.msra.mxu0 0.0
        %539 = vmatprep.subr.mxu0 0.0
        %540 = vmatpush1.msra.mxu0 0.0
        %541 = vmatprep.subr.mxu0 0.0
        %542 = vmatpush1.msra.mxu0 0.0
        %543 = vmatprep.subr.mxu0 0.0
        %544 = vmatpush1.msra.mxu0 0.0
        %545 = vmatprep.subr.mxu0 0.0
        %546 = vmatpush1.msra.mxu0 0.0
        %547 = vmatprep.mubr.f32.mxu0 0.0
        %548 = vmatmul.mubr.f32.gmra.mrb[0].mxu0 %v466
        %v549 = vpop.f32.mrb[0].mxu0
        %v550 = vadd.f32 0.0, %v549
        %v551 = vpop.f32.mrb[0].mxu0
        %552 = vmatprep.mubr.f32.mxu0 0.0
        %553 = vmatmul.mubr.f32.gmra.mrb[0].mxu0 %v469
        %v554 = vpop.f32.mrb[0].mxu0
        %v555 = vadd.f32 0.0, %v554
        %v556 = vpop.f32.mrb[0].mxu0
        %557 = vmatprep.mubr.f32.mxu0 0.0
        %558 = vmatmul.mubr.f32.gmra.mrb[0].mxu0 %v472
        %v559 = vpop.f32.mrb[0].mxu0
        %v560 = vadd.f32 0.0, %v559
        %v561 = vpop.f32.mrb[0].mxu0
        %562 = vmatprep.mubr.f32.mxu0 0.0
        %563 = vmatmul.mubr.f32.gmra.mrb[0].mxu0 %v475
        %v564 = vpop.f32.mrb[0].mxu0
        %v565 = vadd.f32 0.0, %v564
        %v566 = vpop.f32.mrb[0].mxu0
        %567 = vmatprep.mubr.f32.mxu0 0.0
        %568 = vmatmul.mubr.f32.gmra.mrb[0].mxu0 %v478
        %v569 = vpop.f32.mrb[0].mxu0
        %v570 = vadd.f32 0.0, %v569
        %v571 = vpop.f32.mrb[0].mxu0
        %572 = vmatprep.mubr.f32.mxu0 0.0
        %573 = vmatmul.mubr.f32.gmra.mrb[0].mxu0 %v481
        %v574 = vpop.f32.mrb[0].mxu0
        %v575 = vadd.f32 0.0, %v574
        %v576 = vpop.f32.mrb[0].mxu0
        %577 = vdwg.mxu0
        %578 = vst.msk [vmem:[#allocation2 + $0x8] sm:$0xff] %vm279, %v550
        %579 = vst.msk [vmem:[#allocation2 + $0x10] sm:$0xff] %vm279, %v555
        %580 = vst.msk [vmem:[#allocation2 + $0x28] sm:$0xff] %vm279, %v560
        %581 = vst.msk [vmem:[#allocation2 + $0x30] sm:$0xff] %vm279, %v565
        %582 = vst.msk [vmem:[#allocation2 + $0x48] sm:$0xff] %vm279, %v570
        %583 = vst.msk [vmem:[#allocation2 + $0x50] sm:$0xff] %vm279, %v575
        %v584 = vld [vmem:[#allocation2 + $0x6] sm:$0xff]
        %v585 = vld [vmem:[#allocation2 + $0xe] sm:$0xff]
        %v586 = vld [vmem:[#allocation2 + $0x26] sm:$0xff]
        %v587 = vld [vmem:[#allocation2 + $0x2e] sm:$0xff]
        %v588 = vld [vmem:[#allocation2 + $0x46] sm:$0xff]
        %v589 = vld [vmem:[#allocation2 + $0x4e] sm:$0xff]
        %v590 = vld [vmem:[#allocation2 + $0x7] sm:$0xff]
        %v591 = vld [vmem:[#allocation2 + $0xf] sm:$0xff]
        %v592 = vld [vmem:[#allocation2 + $0x27] sm:$0xff]
        %v593 = vld [vmem:[#allocation2 + $0x2f] sm:$0xff]
        %v594 = vld [vmem:[#allocation2 + $0x47] sm:$0xff]
        %v595 = vld [vmem:[#allocation2 + $0x4f] sm:$0xff]
        %v596 = vadd.f32 %v584, %v590
        %v597 = vadd.f32 %v585, %v591
        %v598 = vadd.f32 %v586, %v592
        %v599 = vadd.f32 %v587, %v593
        %v600 = vadd.f32 %v588, %v594
        %v601 = vadd.f32 %v589, %v595
        %v602 = vld [vmem:[#allocation2 + $0x8] sm:$0xff]
        %v603 = vld [vmem:[#allocation2 + $0x10] sm:$0xff]
        %v604 = vld [vmem:[#allocation2 + $0x28] sm:$0xff]
        %v605 = vld [vmem:[#allocation2 + $0x30] sm:$0xff]
        %v606 = vld [vmem:[#allocation2 + $0x48] sm:$0xff]
        %v607 = vld [vmem:[#allocation2 + $0x50] sm:$0xff]
        %v608 = vadd.f32 %v596, %v602
        %v609 = vadd.f32 %v597, %v603
        %v610 = vadd.f32 %v598, %v604
        %v611 = vadd.f32 %v599, %v605
        %v612 = vadd.f32 %v600, %v606
        %v613 = vadd.f32 %v601, %v607
        %v614 = vld [vmem:[#allocation2 + $0x9] sm:$0xff]
        %v615 = vld [vmem:[#allocation2 + $0x11] sm:$0xff]
        %v616 = vld [vmem:[#allocation2 + $0x29] sm:$0xff]
        %v617 = vld [vmem:[#allocation2 + $0x31] sm:$0xff]
        %v618 = vld [vmem:[#allocation2 + $0x49] sm:$0xff]
        %v619 = vld [vmem:[#allocation2 + $0x51] sm:$0xff]
        %v620 = vadd.f32 %v608, %v614
        %v621 = vadd.f32 %v609, %v615
        %v622 = vadd.f32 %v610, %v616
        %v623 = vadd.f32 %v611, %v617
        %v624 = vadd.f32 %v612, %v618
        %v625 = vadd.f32 %v613, %v619
        %v626 = vld [vmem:[#allocation2 + $0xa] sm:$0xff]
        %v627 = vld [vmem:[#allocation2 + $0x12] sm:$0xff]
        %v628 = vld [vmem:[#allocation2 + $0x2a] sm:$0xff]
        %v629 = vld [vmem:[#allocation2 + $0x32] sm:$0xff]
        %v630 = vld [vmem:[#allocation2 + $0x4a] sm:$0xff]
        %v631 = vld [vmem:[#allocation2 + $0x52] sm:$0xff]
        %v632 = vadd.f32 %v620, %v626
        %v633 = vadd.f32 %v621, %v627
        %v634 = vadd.f32 %v622, %v628
        %v635 = vadd.f32 %v623, %v629
        %v636 = vadd.f32 %v624, %v630
        %v637 = vadd.f32 %v625, %v631
        %v638 = vmul.f32 %v632, %v259
        %v639 = vmul.f32 %v633, %v260
        %v640 = vmul.f32 %v634, %v259
        %v641 = vmul.f32 %v635, %v260
        %v642 = vmul.f32 %v636, %v259
        %v643 = vmul.f32 %v637, %v260
        %v644 = vsub.f32 %v459, %v638
        %v645 = vsub.f32 %v460, %v639
        %v646 = vsub.f32 %v461, %v640
        %v647 = vsub.f32 %v462, %v641
        %v648 = vsub.f32 %v463, %v642
        %v649 = vsub.f32 %v464, %v643
        %v650 = vand.u32 2147483647, %v644
        %v651 = vand.u32 2147483647, %v645
        %v652 = vand.u32 2147483647, %v646
        %v653 = vand.u32 2147483647, %v647
        %v654 = vand.u32 2147483647, %v648
        %v655 = vand.u32 2147483647, %v649
        %v656 = vsel %vm279, %v650, 0.0
        %v657 = vsel %vm279, %v651, 0.0
        %v658 = vadd.f32 %v656, %v657
        %v659 = vsel %vm279, %v652, 0.0
        %v660 = vadd.f32 %v658, %v659
        %v661 = vsel %vm279, %v653, 0.0
        %v662 = vadd.f32 %v660, %v661
        %v663 = vsel %vm279, %v654, 0.0
        %v664 = vadd.f32 %v662, %v663
        %v665 = vsel %vm279, %v655, 0.0
        %v666 = vadd.f32 %v664, %v665
        %667 = vadd.xlane.f32.xlu0 %v666
        %v668 = vpop.xlane.xlu0 %667
        %v669 = vrot.slane %v668, 4
        %v670 = vadd.f32 %v668, %v669
        %v671 = vrot.slane %v670, 2
        %v672 = vadd.f32 %v670, %v671
        %v673 = vrot.slane %v672, 1
        %v674 = vadd.f32 %v672, %v673
        %s675 = vtos %v674
        %v676 = vstv %s675
        %677 = vst [vmem:[%s203] sm:$0xff] %v676
        %s678 = sand.u32 %s82, 1
        %s679 = scalar_lea.sflag [#allocation5], %s678
        %s680 = sand.u32 %s82, 1
        %s681 = smul.addr %s680, 8
        %s682 = scalar_lea.vmem [#allocation8], %s681
        // Predicated region
        $region37: #{tpu_custom_call.1} parent=27 // pred_check
          %p683 = pneg %p92
        $region38: #{tpu_custom_call.1} parent=27 // pred_check_branch
          %685 = sbr.rel (%p683) target = $region40
        $region39: #{tpu_custom_call.1} parent=27 // pred_region
          %s687 = ssub.s32 128, 128
          %688 = vsyncadd %s679, %s687
          %s689 = smul.addr %s22, 128
          %s690 = scalar_lea.hbm %s2, %s689
          %s692 = sshll.u32 %s682, 4
          %s693 = int_to_ptr.vmem [resolvable:$true] %s692
          %695 = dma.vmem_to_hbm [thread:$0]  %s693, 128, %s690, %s679
        $region40: #{tpu_custom_call.1} parent=27 // pred_fallthru
          _
      $region28: #{tpu_custom_call.1} parent=5 // pred_fallthru
        _
      %p696 = scmp.le.s32.totalorder 2, %s17
      // Predicated region
      $region41: #{tpu_custom_call.1} parent=5 // pred_check
        %p697 = pneg %p696
      $region42: #{tpu_custom_call.1} parent=5 // pred_check_branch
        %699 = sbr.rel (%p697) target = $region44
      $region43: #{tpu_custom_call.1} parent=5 // pred_region
        %s700 = ssub.s32 %s17, 2
        // Predicated region
        $region45: #{tpu_custom_call.1} parent=43 // pred_check
          %p701 = pneg %p98
        $region46: #{tpu_custom_call.1} parent=43 // pred_check_branch
          %703 = sbr.rel (%p701) target = $region48
        $region47: #{tpu_custom_call.1} parent=43 // pred_region
          %s704 = sand.u32 %s83, 1
          %s705 = scalar_lea.sflag [#allocation5], %s704
          %s706 = sand.u32 %s83, 1
          %s707 = smul.addr %s706, 8
          %s708 = scalar_lea.vmem [#allocation8], %s707
          %709 = dma.done %s705, 128
        $region48: #{tpu_custom_call.1} parent=43 // pred_fallthru
          _
      $region44: #{tpu_custom_call.1} parent=5 // pred_fallthru
        _
    $region6: #{tpu_custom_call.1} parent=1 // loop_footer
      %s21 = sadd.s32 1, %s17
    $region7: #{tpu_custom_call.1} parent=1 // loop_footer_branch
      %16 = sbr.rel target = $region3
    $region8: #{tpu_custom_call.1} parent=1 // loop_exit
      _
    %710 = vsyncpa [#allocation4], 1
    %s711 = scalar_lea.sflag [#allocation4], 1
    %712 = vsyncpa %s711, 1
    %713 = vsyncpa [#allocation7], 1
    %s714 = scalar_lea.sflag [#allocation7], 1
    %715 = vsyncpa %s714, 1
    %716 = vsyncpa [#allocation5], 1
    %s717 = scalar_lea.sflag [#allocation5], 1
    %718 = vsyncpa %s717, 1

</llo_original>
